<compile_context>
chip_gen: v7x
topology: tpu7x:2x2x1
jax: 0.10.0
libtpu: 0.0.40
codegen_flags: <defaults>
</compile_context>

<pallas_src>
import jax
import jax.numpy as jnp
from jax.experimental import pallas as pl
from jax.experimental.pallas import tpu as pltpu


def hpa_sub_kernel(x_ref, w1_ref, b1_ref, w2_ref, b2_ref, o_ref, gap_ref):
    # x_ref:  (TB, C, HW_chunk) bf16     w1_ref: (C, 512) f32   b1_ref: (1, 512)
    # w2_ref: (512, classes_pad) f32     b2_ref: (1, classes_pad)
    # o_ref:  (TB, classes_pad) f32      gap_ref: (TB, C) f32 scratch accumulator
    j = pl.program_id(1)

    @pl.when(j == 0)
    def _():
        gap_ref[...] = jnp.zeros_like(gap_ref)

    # Widen-while-reducing: bf16 tile streamed from HBM, f32 accumulation.
    # (The 1/HW average-pool scale is pre-folded into w1, so a sum suffices.)
    gap_ref[...] += jnp.sum(x_ref[...], axis=-1, dtype=jnp.float32)

    @pl.when(j == pl.num_programs(1) - 1)
    def _():
        h = jnp.dot(gap_ref[...], w1_ref[...], preferred_element_type=jnp.float32)
        h = jnp.maximum(h + b1_ref[...], 0.0)     # ReLU; Dropout(0.2) = identity at eval
        out = jnp.dot(h, w2_ref[...], preferred_element_type=jnp.float32) + b2_ref[...]
        o_ref[...] = out.astype(o_ref.dtype)


def _round_up(x, m):
    return ((x + m - 1) // m) * m


def _vmem_capacity_bytes():
    """Generation-aware VMEM capacity (128 MiB v5e/v6e, 64 MiB per-TC v7x)."""
    try:
        return int(pltpu.get_tpu_info().vmem_capacity_bytes)
    except Exception:
        return 64 * 1024 * 1024          # conservative fallback: v7x per-core VMEM


def _choose_batch_tiling(B, tb_max):
    """Pick (TB, B_pad) minimizing padded rows, preferring >= 2 grid steps so
    v7x can shard the 'parallel' batch axis over both TensorCores. Padding is
    only accepted when small, since padded rows are pure wasted HBM bandwidth
    on single-core chips."""
    n_tiles = pl.cdiv(B, tb_max)
    if n_tiles == 1 and B >= 16:
        tb2 = _round_up(pl.cdiv(B, 2), 8)
        if 2 * tb2 - B <= max(8, B // 8):   # accept a 2-way split only if pad is small
            n_tiles = 2
    if n_tiles == 1:
        return B, B                          # single full-extent tile, zero padding
    tb = _round_up(pl.cdiv(B, n_tiles), 8)
    return tb, _round_up(B, tb)


def hpa_sub_forward(x_nchw, w1, b1, w2, b2, *, vmem_budget_bytes=None):
    """x_nchw: (B, C, H, W). Returns (B, classes) float32.

    vmem_budget_bytes: optional override of the VMEM capacity used for tile
    sizing (used in tests to force the spatial-chunk accumulation path)."""
    B, C, H, W = x_nchw.shape
    HW = H * W
    hidden = w1.shape[1]
    classes = w2.shape[1]

    # --- constant / layout prep (plain JAX glue) -----------------------------
    # Stream x in bf16: halves HBM traffic on a purely bandwidth-bound kernel.
    x_stream = x_nchw if x_nchw.dtype == jnp.bfloat16 else x_nchw.astype(jnp.bfloat16)
    x_flat = x_stream.reshape(B, C, HW)

    # Fold the average-pool 1/HW scale (true HW, not padded) into w1.
    w1_scaled = w1.astype(jnp.float32) * (1.0 / HW)
    b1 = b1.astype(jnp.float32).reshape(1, hidden)
    w2 = w2.astype(jnp.float32)
    b2 = b2.astype(jnp.float32).reshape(1, classes)

    # Lane-dense padded classes (zero columns, sliced off at the end).
    classes_pad = _round_up(classes, 128)
    if classes_pad != classes:
        w2 = jnp.pad(w2, ((0, 0), (0, classes_pad - classes)))
        b2 = jnp.pad(b2, ((0, 0), (0, classes_pad - classes)))

    # Lane-dense spatial axis: pad HW to a multiple of 128 with zeros
    # (harmless to the sum; the 1/HW scale above already used the true HW).
    HW_pad = _round_up(HW, 128)

    # --- generation-aware VMEM budget & tile sizing ---------------------------
    x_item = 2                                               # bf16
    real_cap = _vmem_capacity_bytes()
    vmem_cap = vmem_budget_bytes if vmem_budget_bytes is not None else real_cap

    # Weights/biases keep constant block indices but still get 2 pipeline buffers.
    weight_buf = 2 * 4 * (C * hidden + hidden + hidden * classes_pad + classes_pad)

    # Per-batch-row VMEM cost: 2 pipeline buffers of bf16 x, room for an f32
    # widening temp in the reduce, double-buffered out tile, f32 scratch/temps.
    x_bpe = 2 * x_item + 4
    aux_row = 2 * classes_pad * 4 + C * 4 + hidden * 4 + classes_pad * 4

    usable = int(vmem_cap * 0.75)
    min_rows = 8
    min_tile = min_rows * (C * 128 * x_bpe + aux_row)
    x_budget = max(usable - weight_buf, min_tile)

    # Chunk the spatial axis only if even a TB=8 tile with the full feature map
    # does not fit the budget (huge C*HW; worst on v7x's 64 MiB VMEM).
    budget_for_x = max(x_budget - min_rows * aux_row, min_rows * C * 128 * x_bpe)
    n_hw = pl.cdiv(min_rows * C * HW_pad * x_bpe, budget_for_x)
    hw_chunk = _round_up(pl.cdiv(HW_pad, n_hw), 128)
    n_hw = pl.cdiv(HW_pad, hw_chunk)
    HW_pad = n_hw * hw_chunk

    if HW_pad != HW:
        x_flat = jnp.pad(x_flat, ((0, 0), (0, 0), (0, HW_pad - HW)))

    per_row = C * hw_chunk * x_bpe + aux_row
    tb_max = max(min_rows, (x_budget // per_row) // 8 * 8)

    TB, B_pad = _choose_batch_tiling(B, tb_max)
    if B_pad != B:
        x_flat = jnp.pad(x_flat, ((0, B_pad - B), (0, 0), (0, 0)))

    grid = (B_pad // TB, n_hw)

    # Allocation-derived VMEM limit + headroom for Mosaic internal scratch,
    # clamped to the physical per-core capacity (64 MiB v7x / 128 MiB v5e,v6e).
    vmem_limit = weight_buf + TB * per_row + 10 * 1024 * 1024
    vmem_limit = int(max(16 * 1024 * 1024, min(vmem_limit, real_cap)))

    # Advisory cost estimate so XLA can overlap neighbors.
    bytes_accessed = (
        B_pad * C * HW_pad * x_item
        + 4 * (C * hidden + hidden + hidden * classes_pad + classes_pad)
        + B_pad * classes_pad * 4
    )
    flops = 2 * B_pad * (C * hidden + hidden * classes_pad)
    cost = pl.CostEstimate(flops=flops, transcendentals=0, bytes_accessed=bytes_accessed)

    out_padded = pl.pallas_call(
        hpa_sub_kernel,
        out_shape=jax.ShapeDtypeStruct((B_pad, classes_pad), jnp.float32),
        grid=grid,
        in_specs=[
            # x: tiled over (batch, spatial chunk); streamed/double-buffered in bf16.
            pl.BlockSpec((TB, C, hw_chunk), lambda i, j: (i, 0, j)),
            # Weights/biases: constant block index -> VMEM-resident across the grid.
            pl.BlockSpec((C, hidden), lambda i, j: (0, 0)),
            pl.BlockSpec((1, hidden), lambda i, j: (0, 0)),
            pl.BlockSpec((hidden, classes_pad), lambda i, j: (0, 0)),
            pl.BlockSpec((1, classes_pad), lambda i, j: (0, 0)),
        ],
        out_specs=pl.BlockSpec((TB, classes_pad), lambda i, j: (i, 0)),
        scratch_shapes=[pltpu.VMEM((TB, C), jnp.float32)],   # pooled-sum accumulator
        compiler_params=pltpu.CompilerParams(
            dimension_semantics=("parallel", "arbitrary"),   # batch parallel, HW reduce
            vmem_limit_bytes=vmem_limit,
        ),
        cost_estimate=cost,
    )(x_flat, w1_scaled, b1, w2, b2)

    # Slice away batch/class padding.
    # TODO(synk): PyTorch's .squeeze() also drops the batch dim when B == 1; we
    # always return (B, classes).
    return out_padded[:B, :classes]


def init_params(key, features, classes, hidden=512):
    """Deterministic init mimicking PyTorch Linear default U(-1/sqrt(fan_in), +)."""
    k1, k2, k3, k4 = jax.random.split(key, 4)
    lim1 = 1.0 / jnp.sqrt(features)
    lim2 = 1.0 / jnp.sqrt(hidden)
    w1 = jax.random.uniform(k1, (features, hidden), jnp.float32, -lim1, lim1)
    b1 = jax.random.uniform(k2, (1, hidden), jnp.float32, -lim1, lim1)
    w2 = jax.random.uniform(k3, (hidden, classes), jnp.float32, -lim2, lim2)
    b2 = jax.random.uniform(k4, (1, classes), jnp.float32, -lim2, lim2)
    return w1, b1, w2, b2


def _reference(x, w1, b1, w2, b2):
    """Pure-JAX f32 reference (GAP -> Linear -> ReLU -> Linear; Dropout=identity)."""
    B, C = x.shape[:2]
    gap = jnp.mean(x.reshape(B, C, -1), axis=-1)
    return jnp.maximum(gap @ w1 + b1, 0.0) @ w2 + b2


if __name__ == "__main__":
    key = jax.random.PRNGKey(0)
    kx, kp, kx2 = jax.random.split(key, 3)

    # Shapes consistent with the module: batch=2, features(C)=32, 16x16 spatial, 10 classes.
    B, C, H, W = 2, 32, 16, 16
    classes = 10
    x = jax.random.normal(kx, (B, C, H, W), jnp.float32)
    w1, b1, w2, b2 = init_params(kp, features=C, classes=classes)

    out = jax.block_until_ready(hpa_sub_forward(x, w1, b1, w2, b2))
    ref = _reference(x, w1, b1, w2, b2)
    assert out.shape == (B, classes)
    # bf16 x streaming -> compare against the f32 reference at bf16-level tolerance.
    assert jnp.allclose(out, ref, atol=1e-2, rtol=1e-2), float(jnp.max(jnp.abs(out - ref)))

    # Multi-tile batch grid + non-128 spatial size (HW = 14*14 = 196, padded to 256).
    B2, H2, W2 = 48, 14, 14
    x2 = jax.random.normal(kx2, (B2, C, H2, W2), jnp.float32)
    ref2 = _reference(x2, w1, b1, w2, b2)

    out2 = jax.block_until_ready(hpa_sub_forward(x2, w1, b1, w2, b2))
    assert out2.shape == (B2, classes)
    assert jnp.allclose(out2, ref2, atol=1e-2, rtol=1e-2), float(jnp.max(jnp.abs(out2 - ref2)))

    # Force a tiny VMEM budget to exercise the spatial-chunk accumulation path
    # (TB=8, 2 HW chunks) that protects huge feature maps on v7x's 64 MiB VMEM.
    out3 = jax.block_until_ready(
        hpa_sub_forward(x2, w1, b1, w2, b2, vmem_budget_bytes=1 * 1024 * 1024))
    assert jnp.allclose(out3, ref2, atol=1e-2, rtol=1e-2), float(jnp.max(jnp.abs(out3 - ref2)))

    print("KERNEL_OK")
</pallas_src>

<mosaic_0001>
module attributes {stable_mosaic.version = 11 : i64} {
  func.func @hpa_sub_kernel(%arg0: i32, %arg1: i32, %arg2: memref<2x32x256xbf16, #tpu.memory_space<vmem>>, %arg3: memref<32x512xf32, #tpu.memory_space<vmem>>, %arg4: memref<1x512xf32, #tpu.memory_space<vmem>>, %arg5: memref<512x128xf32, #tpu.memory_space<vmem>>, %arg6: memref<1x128xf32, #tpu.memory_space<vmem>>, %arg7: memref<2x128xf32, #tpu.memory_space<vmem>>, %arg8: memref<2x32xf32, #tpu.memory_space<vmem>>) attributes {dimension_semantics = [#tpu.dimension_semantics<parallel>, #tpu.dimension_semantics<arbitrary>], iteration_bounds = array<i64: 1, 1>, scalar_prefetch = 0 : i64, scratch_operands = 1 : i64, tpu.core_type = #tpu.core_type<tc>, window_params = [{transform_indices = @transform_0, window_bounds = array<i64: 2, 32, 256>}, {pipeline_mode = #tpu.pipeline_mode<synchronous>, transform_indices = @transform_1, window_bounds = array<i64: 32, 512>}, {pipeline_mode = #tpu.pipeline_mode<synchronous>, transform_indices = @transform_2, window_bounds = array<i64: 1, 512>}, {pipeline_mode = #tpu.pipeline_mode<synchronous>, transform_indices = @transform_3, window_bounds = array<i64: 512, 128>}, {pipeline_mode = #tpu.pipeline_mode<synchronous>, transform_indices = @transform_4, window_bounds = array<i64: 1, 128>}, {transform_indices = @transform_5, window_bounds = array<i64: 2, 128>}]} {
    %c0_i32 = arith.constant 0 : i32
    %0 = arith.cmpi eq, %arg1, %c0_i32 : i32
    %1 = arith.extui %0 : i1 to i32
    %c0_i32_0 = arith.constant 0 : i32
    %2 = arith.cmpi ne, %1, %c0_i32_0 : i32
    scf.if %2 {
      %cst_9 = arith.constant 0.000000e+00 : f32
      %12 = vector.broadcast %cst_9 : f32 to vector<2x32xf32>
      %c0_10 = arith.constant 0 : index
      %c0_11 = arith.constant 0 : index
      %13 = vector.load %arg8[%c0_10, %c0_11] : memref<2x32xf32, #tpu.memory_space<vmem>>, vector<2x32xf32>
      tpu.vector_store %arg8[%c0_10, %c0_11], %12 {strides = array<i32>} : memref<2x32xf32, #tpu.memory_space<vmem>>, vector<2x32xf32>,
    } else {
    }
    %c0 = arith.constant 0 : index
    %c0_1 = arith.constant 0 : index
    %3 = vector.load %arg8[%c0, %c0_1] : memref<2x32xf32, #tpu.memory_space<vmem>>, vector<2x32xf32>
    %c0_2 = arith.constant 0 : index
    %c0_3 = arith.constant 0 : index
    %c0_4 = arith.constant 0 : index
    %4 = vector.load %arg2[%c0_2, %c0_3, %c0_4] : memref<2x32x256xbf16, #tpu.memory_space<vmem>>, vector<2x32x256xbf16>
    %5 = arith.extf %4 : vector<2x32x256xbf16> to vector<2x32x256xf32>
    %cst = arith.constant dense<0.000000e+00> : vector<2x32xf32>
    %6 = vector.multi_reduction <add>, %5, %cst [2] : vector<2x32x256xf32> to vector<2x32xf32>
    %7 = arith.addf %3, %6 : vector<2x32xf32>
    %c0_5 = arith.constant 0 : index
    %c0_6 = arith.constant 0 : index
    %8 = vector.load %arg8[%c0_5, %c0_6] : memref<2x32xf32, #tpu.memory_space<vmem>>, vector<2x32xf32>
    tpu.vector_store %arg8[%c0_5, %c0_6], %7 {strides = array<i32>} : memref<2x32xf32, #tpu.memory_space<vmem>>, vector<2x32xf32>,
    %c0_i32_7 = arith.constant 0 : i32
    %9 = arith.cmpi eq, %arg1, %c0_i32_7 : i32
    %10 = arith.extui %9 : i1 to i32
    %c0_i32_8 = arith.constant 0 : i32
    %11 = arith.cmpi ne, %10, %c0_i32_8 : i32
    scf.if %11 {
      %c0_9 = arith.constant 0 : index
      %c0_10 = arith.constant 0 : index
      %12 = vector.load %arg8[%c0_9, %c0_10] : memref<2x32xf32, #tpu.memory_space<vmem>>, vector<2x32xf32>
      %c0_11 = arith.constant 0 : index
      %c0_12 = arith.constant 0 : index
      %13 = vector.load %arg3[%c0_11, %c0_12] : memref<32x512xf32, #tpu.memory_space<vmem>>, vector<32x512xf32>
      %cst_13 = arith.constant dense<0.000000e+00> : vector<2x512xf32>
      %14 = tpu.matmul %12, %13, %cst_13 {dimension_numbers = #tpu.dot_dimension_numbers<[1], [0], [0], [1], [0, 0, 1, 1], [], []>} : vector<2x32xf32>, vector<32x512xf32>, vector<2x512xf32> -> vector<2x512xf32>
      %c0_14 = arith.constant 0 : index
      %c0_15 = arith.constant 0 : index
      %15 = vector.load %arg4[%c0_14, %c0_15] : memref<1x512xf32, #tpu.memory_space<vmem>>, vector<1x512xf32>
      %16 = vector.broadcast %15 : vector<1x512xf32> to vector<2x512xf32>
      %17 = arith.addf %14, %16 : vector<2x512xf32>
      %cst_16 = arith.constant 0.000000e+00 : f32
      %18 = vector.broadcast %cst_16 : f32 to vector<2x512xf32>
      %19 = arith.maximumf %17, %18 : vector<2x512xf32>
      %c0_17 = arith.constant 0 : index
      %c0_18 = arith.constant 0 : index
      %20 = vector.load %arg5[%c0_17, %c0_18] : memref<512x128xf32, #tpu.memory_space<vmem>>, vector<512x128xf32>
      %cst_19 = arith.constant dense<0.000000e+00> : vector<2x128xf32>
      %21 = tpu.matmul %19, %20, %cst_19 {dimension_numbers = #tpu.dot_dimension_numbers<[1], [0], [0], [1], [0, 0, 1, 1], [], []>} : vector<2x512xf32>, vector<512x128xf32>, vector<2x128xf32> -> vector<2x128xf32>
      %c0_20 = arith.constant 0 : index
      %c0_21 = arith.constant 0 : index
      %22 = vector.load %arg6[%c0_20, %c0_21] : memref<1x128xf32, #tpu.memory_space<vmem>>, vector<1x128xf32>
      %23 = vector.broadcast %22 : vector<1x128xf32> to vector<2x128xf32>
      %24 = arith.addf %21, %23 : vector<2x128xf32>
      %c0_22 = arith.constant 0 : index
      %c0_23 = arith.constant 0 : index
      %25 = vector.load %arg7[%c0_22, %c0_23] : memref<2x128xf32, #tpu.memory_space<vmem>>, vector<2x128xf32>
      tpu.vector_store %arg7[%c0_22, %c0_23], %24 {strides = array<i32>} : memref<2x128xf32, #tpu.memory_space<vmem>>, vector<2x128xf32>,
    } else {
    }
    return
  }
  func.func @transform_0(%arg0: i32, %arg1: i32) -> (i32, i32, i32) {
    %c0_i32 = arith.constant 0 : i32
    %c0_i32_0 = arith.constant 0 : i32
    return %arg0, %c0_i32, %arg1 : i32, i32, i32
  }
  func.func @transform_1(%arg0: i32, %arg1: i32) -> (i32, i32) {
    %c0_i32 = arith.constant 0 : i32
    %c0_i32_0 = arith.constant 0 : i32
    %c0_i32_1 = arith.constant 0 : i32
    return %c0_i32, %c0_i32_0 : i32, i32
  }
  func.func @transform_2(%arg0: i32, %arg1: i32) -> (i32, i32) {
    %c0_i32 = arith.constant 0 : i32
    %c0_i32_0 = arith.constant 0 : i32
    %c0_i32_1 = arith.constant 0 : i32
    return %c0_i32, %c0_i32_0 : i32, i32
  }
  func.func @transform_3(%arg0: i32, %arg1: i32) -> (i32, i32) {
    %c0_i32 = arith.constant 0 : i32
    %c0_i32_0 = arith.constant 0 : i32
    %c0_i32_1 = arith.constant 0 : i32
    return %c0_i32, %c0_i32_0 : i32, i32
  }
  func.func @transform_4(%arg0: i32, %arg1: i32) -> (i32, i32) {
    %c0_i32 = arith.constant 0 : i32
    %c0_i32_0 = arith.constant 0 : i32
    %c0_i32_1 = arith.constant 0 : i32
    return %c0_i32, %c0_i32_0 : i32, i32
  }
  func.func @transform_5(%arg0: i32, %arg1: i32) -> (i32, i32) {
    %c0_i32 = arith.constant 0 : i32
    %c0_i32_0 = arith.constant 0 : i32
    return %arg0, %c0_i32 : i32, i32
  }
}

</mosaic_0001>

<llo_original>
// kernel: tpu_custom_call.1
$region0: #{tpu_custom_call.1}
  #allocation0 [shape = 'u32[]', space=smem, size = 0x4, offset = 0x4, fixed_abs, tag = 'smem constant byte address 0x4 - core index']
  #allocation1 [shape = 'u32[144,128]{1,0:T(1,128)}', space=vmem, size = 0x12000, scoped, tag = 'internal scratch']
  #allocation2 [shape = 'f32[2,32]{1,0:T(2,128)}', space=vmem, size = 0x400, scoped, tag = 'scratch operand']
  %s0 = inlined_call_operand.hbm [shape: bf16[2,32,256], index: 0, kind: input, shape index: {}]
  %s1 = inlined_call_operand.hbm [shape: f32[32,512], index: 1, kind: input, shape index: {}]
  %s2 = inlined_call_operand.vmem [shape: f32[1,512], index: 2, kind: input, shape index: {}]
  %s3 = inlined_call_operand.hbm [shape: f32[512,128], index: 3, kind: input, shape index: {}]
  %s4 = inlined_call_operand.vmem [shape: f32[1,128], index: 4, kind: input, shape index: {}]
  %s5 = inlined_call_operand.hbm [shape: f32[2,128], index: 5, kind: output, shape index: {}]
  %s6 = sld [smem:[#allocation0]]
  $region50: #{tpu_custom_call.1} parent=0
    _
  %s8 = ssub.s32 1, %s6
  %s9 = scalar_select 0, %s8, %s6
  $region1: #{tpu_custom_call.1} parent=0
    #allocation3 [shape = 'u8[32768]{0}', space=vmem, size = 0x8000, scoped, tag = 'input window, operand 0, single buffered']
    #allocation4 [shape = 's32[1]{0}', space=sflag, size = 0x4, scoped, tag = 'scoped memory for tpu_custom_call.1']
    #allocation5 [shape = 's32[1]{0}', space=sflag, size = 0x4, scoped, tag = 'scoped memory for tpu_custom_call.1']
    #allocation6 [shape = 'u8[65536]{0}', space=vmem, size = 0x10000, scoped, tag = 'input window, operand 1, single buffered']
    #allocation7 [shape = 's32[1]{0}', space=sflag, size = 0x4, scoped, tag = 'scoped memory for tpu_custom_call.1']
    #allocation8 [shape = 'u8[262144]{0}', space=vmem, size = 0x40000, scoped, tag = 'input window, operand 3, single buffered']
    #allocation9 [shape = 'u8[1024]{0}', space=vmem, size = 0x400, scoped, tag = 'output window, operand 0, single buffered']
    %10 = vsyncpa [#allocation4], 0
    %11 = vsyncpa [#allocation7], 0
    %12 = vsyncpa [#allocation5], 0
    // Predicated region
    $region2: #{tpu_custom_call.1} parent=1 // pred_check
      _
    $region3: #{tpu_custom_call.1} parent=1 // pred_check_branch
      %14 = sbr.rel (0) target = $region5
    $region4: #{tpu_custom_call.1} parent=1 // pred_region
      %s16 = ssub.s32 1024, 1024
      %17 = vsyncadd [#allocation4], %s16
      %s18 = sshll.u32 [#allocation3], 4
      %s19 = int_to_ptr.vmem [resolvable:$true] %s18
      %24 = dma.hbm_to_vmem [thread:$0]  %s0, 1024, %s19, [#allocation4], 128, 128, 8
    $region5: #{tpu_custom_call.1} parent=1 // pred_fallthru
      _
    // Predicated region
    $region6: #{tpu_custom_call.1} parent=1 // pred_check
      _
    $region7: #{tpu_custom_call.1} parent=1 // pred_check_branch
      %26 = sbr.rel (0) target = $region9
    $region8: #{tpu_custom_call.1} parent=1 // pred_region
      %s28 = ssub.s32 2048, 2048
      %29 = vsyncadd [#allocation7], %s28
      %s30 = sshll.u32 [#allocation6], 4
      %s31 = int_to_ptr.vmem [resolvable:$true] %s30
      %36 = dma.hbm_to_vmem [thread:$0]  %s1, 2048, %s31, [#allocation7], 512, 512, 32
    $region9: #{tpu_custom_call.1} parent=1 // pred_fallthru
      _
    // Predicated region
    $region10: #{tpu_custom_call.1} parent=1 // pred_check
      _
    $region11: #{tpu_custom_call.1} parent=1 // pred_check_branch
      %38 = sbr.rel (0) target = $region13
    $region12: #{tpu_custom_call.1} parent=1 // pred_region
      _
    $region13: #{tpu_custom_call.1} parent=1 // pred_fallthru
      _
    // Predicated region
    $region14: #{tpu_custom_call.1} parent=1 // pred_check
      _
    $region15: #{tpu_custom_call.1} parent=1 // pred_check_branch
      %40 = sbr.rel (0) target = $region17
    $region16: #{tpu_custom_call.1} parent=1 // pred_region
      %s42 = ssub.s32 8192, 8192
      %43 = vsyncadd [#allocation7], %s42
      %s44 = sshll.u32 [#allocation8], 4
      %s45 = int_to_ptr.vmem [resolvable:$true] %s44
      %50 = dma.hbm_to_vmem [thread:$0]  %s3, 8192, %s45, [#allocation7], 128, 128, 8
    $region17: #{tpu_custom_call.1} parent=1 // pred_fallthru
      _
    // Predicated region
    $region18: #{tpu_custom_call.1} parent=1 // pred_check
      _
    $region19: #{tpu_custom_call.1} parent=1 // pred_check_branch
      %52 = sbr.rel (0) target = $region21
    $region20: #{tpu_custom_call.1} parent=1 // pred_region
      _
    $region21: #{tpu_custom_call.1} parent=1 // pred_fallthru
      _
    // Predicated region
    $region22: #{tpu_custom_call.1} parent=1 // pred_check
      _
    $region23: #{tpu_custom_call.1} parent=1 // pred_check_branch
      %54 = sbr.rel (0) target = $region25
    $region24: #{tpu_custom_call.1} parent=1 // pred_region
      %55 = dma.done [#allocation4], 1024
    $region25: #{tpu_custom_call.1} parent=1 // pred_fallthru
      _
    // Predicated region
    $region26: #{tpu_custom_call.1} parent=1 // pred_check
      _
    $region27: #{tpu_custom_call.1} parent=1 // pred_check_branch
      %57 = sbr.rel (0) target = $region29
    $region28: #{tpu_custom_call.1} parent=1 // pred_region
      %58 = dma.done [#allocation7], 2048
    $region29: #{tpu_custom_call.1} parent=1 // pred_fallthru
      _
    // Predicated region
    $region30: #{tpu_custom_call.1} parent=1 // pred_check
      _
    $region31: #{tpu_custom_call.1} parent=1 // pred_check_branch
      %60 = sbr.rel (0) target = $region33
    $region32: #{tpu_custom_call.1} parent=1 // pred_region
      %61 = dma.done [#allocation7], 8192
    $region33: #{tpu_custom_call.1} parent=1 // pred_fallthru
      _
    %p62 = scmp.eq.s32.totalorder 0, 0
    // Predicated region
    $region34: #{tpu_custom_call.1} parent=1 // pred_check
      %p63 = pneg %p62
    $region35: #{tpu_custom_call.1} parent=1 // pred_check_branch
      %65 = sbr.rel (%p63) target = $region37
    $region36: #{tpu_custom_call.1} parent=1 // pred_region
      %vm66 = vcmask 254976
      %67 = vst.msk [vmem:[#allocation2] sm:$0x3] %vm66, 0.0
    $region37: #{tpu_custom_call.1} parent=1 // pred_fallthru
      _
    %v68 = vld [vmem:[#allocation2] sm:$0x3]
    %v69 = vld [vmem:[#allocation3] sm:$0xff]
    %v70 = vld [vmem:[#allocation3 + $0x8] sm:$0xff]
    %v71 = vld [vmem:[#allocation3 + $0x10] sm:$0xff]
    %v72 = vld [vmem:[#allocation3 + $0x18] sm:$0xff]
    %v73 = vld [vmem:[#allocation3 + $0x20] sm:$0xff]
    %v74 = vld [vmem:[#allocation3 + $0x28] sm:$0xff]
    %v75 = vld [vmem:[#allocation3 + $0x30] sm:$0xff]
    %v76 = vld [vmem:[#allocation3 + $0x38] sm:$0xff]
    %v77 = vunpack.c.l.bf16 %v69
    %v78 = vunpack.c.h.bf16 %v69
    %v79 = vunpack.c.l.bf16 %v70
    %v80 = vunpack.c.h.bf16 %v70
    %v81 = vunpack.c.l.bf16 %v71
    %v82 = vunpack.c.h.bf16 %v71
    %v83 = vunpack.c.l.bf16 %v72
    %v84 = vunpack.c.h.bf16 %v72
    %v85 = vunpack.c.l.bf16 %v73
    %v86 = vunpack.c.h.bf16 %v73
    %v87 = vunpack.c.l.bf16 %v74
    %v88 = vunpack.c.h.bf16 %v74
    %v89 = vunpack.c.l.bf16 %v75
    %v90 = vunpack.c.h.bf16 %v75
    %v91 = vunpack.c.l.bf16 %v76
    %v92 = vunpack.c.h.bf16 %v76
    %v93 = vadd.f32 %v77, %v78
    %94 = vadd.xlane.f32.xlu0 %v93
    %v95 = vpop.xlane.xlu0 %94
    %v96 = vadd.f32 %v79, %v80
    %97 = vadd.xlane.f32.xlu0 %v96
    %v98 = vpop.xlane.xlu0 %97
    %v99 = vadd.f32 %v81, %v82
    %100 = vadd.xlane.f32.xlu0 %v99
    %v101 = vpop.xlane.xlu0 %100
    %v102 = vadd.f32 %v83, %v84
    %103 = vadd.xlane.f32.xlu0 %v102
    %v104 = vpop.xlane.xlu0 %103
    %v105 = vadd.f32 %v85, %v86
    %106 = vadd.xlane.f32.xlu0 %v105
    %v107 = vpop.xlane.xlu0 %106
    %v108 = vadd.f32 %v87, %v88
    %109 = vadd.xlane.f32.xlu0 %v108
    %v110 = vpop.xlane.xlu0 %109
    %v111 = vadd.f32 %v89, %v90
    %112 = vadd.xlane.f32.xlu0 %v111
    %v113 = vpop.xlane.xlu0 %112
    %v114 = vadd.f32 %v91, %v92
    %115 = vadd.xlane.f32.xlu0 %v114
    %v116 = vpop.xlane.xlu0 %115
    %v125 = vlaneseq
    %v126 = vand.u32 %v125, 127
    %v127 = vlaneseq
    %v128 = vshrl.u32 %v127, 7
    %v129 = vsub.s32 %v126, %v128
    %v130 = vrot.slane %v95, %v129
    %v131 = vadd.s32 %v126, 4294967288
    %v132 = vlaneseq
    %v133 = vshrl.u32 %v132, 7
    %v134 = vsub.s32 %v131, %v133
    %v135 = vrot.slane %v98, %v134
    %vm136 = vcmask 130112
    %v137 = vsel %vm136, %v135, %v130
    %v138 = vadd.s32 %v126, 4294967280
    %v139 = vlaneseq
    %v140 = vshrl.u32 %v139, 7
    %v141 = vsub.s32 %v138, %v140
    %v142 = vrot.slane %v101, %v141
    %vm143 = vcmask 195712
    %v144 = vsel %vm143, %v142, %v137
    %v145 = vadd.s32 %v126, 4294967272
    %v146 = vlaneseq
    %v147 = vshrl.u32 %v146, 7
    %v148 = vsub.s32 %v145, %v147
    %v149 = vrot.slane %v104, %v148
    %vm150 = vcmask 261312
    %v151 = vsel %vm150, %v149, %v144
    %v152 = vlaneseq
    %v153 = vshrl.u32 %v152, 7
    %v154 = vsub.s32 %v126, %v153
    %v155 = vrot.slane %v107, %v154
    %v156 = vlaneseq
    %v157 = vshrl.u32 %v156, 7
    %v158 = vsub.s32 %v131, %v157
    %v159 = vrot.slane %v110, %v158
    %v160 = vsel %vm136, %v159, %v155
    %v161 = vlaneseq
    %v162 = vshrl.u32 %v161, 7
    %v163 = vsub.s32 %v138, %v162
    %v164 = vrot.slane %v113, %v163
    %v165 = vsel %vm143, %v164, %v160
    %v166 = vlaneseq
    %v167 = vshrl.u32 %v166, 7
    %v168 = vsub.s32 %v145, %v167
    %v169 = vrot.slane %v116, %v168
    %v170 = vsel %vm150, %v169, %v165
    %vm171 = vcmask 1041409
    %v172 = vsel %vm171, %v170, %v151
    %v174 = vadd.f32 %v68, %v172
    %vm175 = vcmask 254976
    %176 = vst.msk [vmem:[#allocation2] sm:$0x3] %vm175, %v174
    // Predicated region
    $region38: #{tpu_custom_call.1} parent=1 // pred_check
      %p177 = pneg %p62
    $region39: #{tpu_custom_call.1} parent=1 // pred_check_branch
      %179 = sbr.rel (%p177) target = $region41
    $region40: #{tpu_custom_call.1} parent=1 // pred_region
      %v180 = vld [vmem:[#allocation2] sm:$0x3]
      %v181 = vld [vmem:[#allocation6] sm:$0xff]
      %v182 = vld [vmem:[#allocation6 + $0x8] sm:$0xff]
      %v183 = vld [vmem:[#allocation6 + $0x10] sm:$0xff]
      %v184 = vld [vmem:[#allocation6 + $0x18] sm:$0xff]
      %v185 = vld [vmem:[#allocation6 + $0x20] sm:$0xff]
      %v186 = vld [vmem:[#allocation6 + $0x28] sm:$0xff]
      %v187 = vld [vmem:[#allocation6 + $0x30] sm:$0xff]
      %v188 = vld [vmem:[#allocation6 + $0x38] sm:$0xff]
      %v189 = vld [vmem:[#allocation6 + $0x40] sm:$0xff]
      %v190 = vld [vmem:[#allocation6 + $0x48] sm:$0xff]
      %v191 = vld [vmem:[#allocation6 + $0x50] sm:$0xff]
      %v192 = vld [vmem:[#allocation6 + $0x58] sm:$0xff]
      %v193 = vld [vmem:[#allocation6 + $0x60] sm:$0xff]
      %v194 = vld [vmem:[#allocation6 + $0x68] sm:$0xff]
      %v195 = vld [vmem:[#allocation6 + $0x70] sm:$0xff]
      %v196 = vld [vmem:[#allocation6 + $0x78] sm:$0xff]
      %v197 = vld [vmem:[%s2] sm:$0xf]
      %v199 = vlaneseq
      %v200 = vshrl.u32 %v199, 7
      %v201 = vsub.s32 0, %v200
      %v202 = vrot.slane %v197, %v201
      %v203 = vlaneseq
      %v204 = vshrl.u32 %v203, 7
      %v205 = vsub.s32 1, %v204
      %v206 = vrot.slane %v197, %v205
      %v207 = vlaneseq
      %v208 = vshrl.u32 %v207, 7
      %v209 = vsub.s32 2, %v208
      %v210 = vrot.slane %v197, %v209
      %v211 = vlaneseq
      %v212 = vshrl.u32 %v211, 7
      %v213 = vsub.s32 3, %v212
      %v214 = vrot.slane %v197, %v213
      %vm219 = vcmask 261120
      %v221 = vsel %vm219, %v180, 0
      %223 = vmatprep.subr.mxu0 %v182
      %224 = vmatpush1.msra.mxu0 %v181
      %225 = vmatprep.subr.mxu0 %v186
      %226 = vmatpush1.msra.mxu0 %v185
      %227 = vmatprep.subr.mxu0 %v190
      %228 = vmatpush1.msra.mxu0 %v189
      %229 = vmatprep.subr.mxu0 %v194
      %230 = vmatpush1.msra.mxu0 %v193
      %231 = vmatprep.subr.mxu0 0.0
      %232 = vmatpush1.msra.mxu0 0.0
      %233 = vmatprep.subr.mxu0 0.0
      %234 = vmatpush1.msra.mxu0 0.0
      %235 = vmatprep.subr.mxu0 0.0
      %236 = vmatpush1.msra.mxu0 0.0
      %237 = vmatprep.subr.mxu0 0.0
      %238 = vmatpush1.msra.mxu0 0.0
      %239 = vmatprep.subr.mxu0 0.0
      %240 = vmatpush1.msra.mxu0 0.0
      %241 = vmatprep.subr.mxu0 0.0
      %242 = vmatpush1.msra.mxu0 0.0
      %243 = vmatprep.subr.mxu0 0.0
      %244 = vmatpush1.msra.mxu0 0.0
      %245 = vmatprep.subr.mxu0 0.0
      %246 = vmatpush1.msra.mxu0 0.0
      %247 = vmatprep.subr.mxu0 0.0
      %248 = vmatpush1.msra.mxu0 0.0
      %249 = vmatprep.subr.mxu0 0.0
      %250 = vmatpush1.msra.mxu0 0.0
      %251 = vmatprep.subr.mxu0 0.0
      %252 = vmatpush1.msra.mxu0 0.0
      %253 = vmatprep.subr.mxu0 0.0
      %254 = vmatpush1.msra.mxu0 0.0
      %255 = vmatprep.subr.mxu0 0.0
      %256 = vmatpush1.msra.mxu0 0.0
      %257 = vmatprep.subr.mxu0 0.0
      %258 = vmatpush1.msra.mxu0 0.0
      %259 = vmatprep.subr.mxu0 0.0
      %260 = vmatpush1.msra.mxu0 0.0
      %261 = vmatprep.subr.mxu0 0.0
      %262 = vmatpush1.msra.mxu0 0.0
      %263 = vmatprep.subr.mxu0 0.0
      %264 = vmatpush1.msra.mxu0 0.0
      %265 = vmatprep.subr.mxu0 0.0
      %266 = vmatpush1.msra.mxu0 0.0
      %267 = vmatprep.subr.mxu0 0.0
      %268 = vmatpush1.msra.mxu0 0.0
      %269 = vmatprep.subr.mxu0 0.0
      %270 = vmatpush1.msra.mxu0 0.0
      %271 = vmatprep.subr.mxu0 0.0
      %272 = vmatpush1.msra.mxu0 0.0
      %273 = vmatprep.subr.mxu0 0.0
      %274 = vmatpush1.msra.mxu0 0.0
      %275 = vmatprep.subr.mxu0 0.0
      %276 = vmatpush1.msra.mxu0 0.0
      %277 = vmatprep.subr.mxu0 0.0
      %278 = vmatpush1.msra.mxu0 0.0
      %279 = vmatprep.subr.mxu0 0.0
      %280 = vmatpush1.msra.mxu0 0.0
      %281 = vmatprep.subr.mxu0 0.0
      %282 = vmatpush1.msra.mxu0 0.0
      %283 = vmatprep.subr.mxu0 0.0
      %284 = vmatpush1.msra.mxu0 0.0
      %285 = vmatprep.subr.mxu0 0.0
      %286 = vmatpush1.msra.mxu0 0.0
      %287 = vmatprep.mubr.f32.mxu0 0.0
      %288 = vmatmul.mubr.f32.gmra.mrb[0].mxu0 %v221
      %v289 = vpop.f32.mrb[0].mxu0
      %v290 = vadd.f32 %v202, %v289
      %v291 = vpop.f32.mrb[0].mxu0
      %v292 = vadd.f32 %v206, %v291
      %293 = vdwg.mxu0
      %294 = vmatprep.subr.mxu0 %v184
      %295 = vmatpush1.msra.mxu0 %v183
      %296 = vmatprep.subr.mxu0 %v188
      %297 = vmatpush1.msra.mxu0 %v187
      %298 = vmatprep.subr.mxu0 %v192
      %299 = vmatpush1.msra.mxu0 %v191
      %300 = vmatprep.subr.mxu0 %v196
      %301 = vmatpush1.msra.mxu0 %v195
      %302 = vmatprep.subr.mxu0 0.0
      %303 = vmatpush1.msra.mxu0 0.0
      %304 = vmatprep.subr.mxu0 0.0
      %305 = vmatpush1.msra.mxu0 0.0
      %306 = vmatprep.subr.mxu0 0.0
      %307 = vmatpush1.msra.mxu0 0.0
      %308 = vmatprep.subr.mxu0 0.0
      %309 = vmatpush1.msra.mxu0 0.0
      %310 = vmatprep.subr.mxu0 0.0
      %311 = vmatpush1.msra.mxu0 0.0
      %312 = vmatprep.subr.mxu0 0.0
      %313 = vmatpush1.msra.mxu0 0.0
      %314 = vmatprep.subr.mxu0 0.0
      %315 = vmatpush1.msra.mxu0 0.0
      %316 = vmatprep.subr.mxu0 0.0
      %317 = vmatpush1.msra.mxu0 0.0
      %318 = vmatprep.subr.mxu0 0.0
      %319 = vmatpush1.msra.mxu0 0.0
      %320 = vmatprep.subr.mxu0 0.0
      %321 = vmatpush1.msra.mxu0 0.0
      %322 = vmatprep.subr.mxu0 0.0
      %323 = vmatpush1.msra.mxu0 0.0
      %324 = vmatprep.subr.mxu0 0.0
      %325 = vmatpush1.msra.mxu0 0.0
      %326 = vmatprep.subr.mxu0 0.0
      %327 = vmatpush1.msra.mxu0 0.0
      %328 = vmatprep.subr.mxu0 0.0
      %329 = vmatpush1.msra.mxu0 0.0
      %330 = vmatprep.subr.mxu0 0.0
      %331 = vmatpush1.msra.mxu0 0.0
      %332 = vmatprep.subr.mxu0 0.0
      %333 = vmatpush1.msra.mxu0 0.0
      %334 = vmatprep.subr.mxu0 0.0
      %335 = vmatpush1.msra.mxu0 0.0
      %336 = vmatprep.subr.mxu0 0.0
      %337 = vmatpush1.msra.mxu0 0.0
      %338 = vmatprep.subr.mxu0 0.0
      %339 = vmatpush1.msra.mxu0 0.0
      %340 = vmatprep.subr.mxu0 0.0
      %341 = vmatpush1.msra.mxu0 0.0
      %342 = vmatprep.subr.mxu0 0.0
      %343 = vmatpush1.msra.mxu0 0.0
      %344 = vmatprep.subr.mxu0 0.0
      %345 = vmatpush1.msra.mxu0 0.0
      %346 = vmatprep.subr.mxu0 0.0
      %347 = vmatpush1.msra.mxu0 0.0
      %348 = vmatprep.subr.mxu0 0.0
      %349 = vmatpush1.msra.mxu0 0.0
      %350 = vmatprep.subr.mxu0 0.0
      %351 = vmatpush1.msra.mxu0 0.0
      %352 = vmatprep.subr.mxu0 0.0
      %353 = vmatpush1.msra.mxu0 0.0
      %354 = vmatprep.subr.mxu0 0.0
      %355 = vmatpush1.msra.mxu0 0.0
      %356 = vmatprep.subr.mxu0 0.0
      %357 = vmatpush1.msra.mxu0 0.0
      %358 = vmatprep.mubr.f32.mxu0 0.0
      %359 = vmatmul.mubr.f32.gmra.mrb[0].mxu0 %v221
      %v360 = vpop.f32.mrb[0].mxu0
      %v361 = vadd.f32 %v210, %v360
      %v362 = vpop.f32.mrb[0].mxu0
      %v363 = vadd.f32 %v214, %v362
      %364 = vdwg.mxu0
      %v365 = vmax.f32 %v290, 0.0
      %v366 = vmax.f32 %v292, 0.0
      %v367 = vmax.f32 %v361, 0.0
      %v368 = vmax.f32 %v363, 0.0
      %v369 = vld [vmem:[#allocation8] sm:$0xff]
      %v370 = vld [vmem:[#allocation8 + $0x8] sm:$0xff]
      %v371 = vld [vmem:[#allocation8 + $0x10] sm:$0xff]
      %v372 = vld [vmem:[#allocation8 + $0x18] sm:$0xff]
      %v373 = vld [vmem:[#allocation8 + $0x20] sm:$0xff]
      %v374 = vld [vmem:[#allocation8 + $0x28] sm:$0xff]
      %v375 = vld [vmem:[#allocation8 + $0x30] sm:$0xff]
      %v376 = vld [vmem:[#allocation8 + $0x38] sm:$0xff]
      %v377 = vld [vmem:[#allocation8 + $0x40] sm:$0xff]
      %v378 = vld [vmem:[#allocation8 + $0x48] sm:$0xff]
      %v379 = vld [vmem:[#allocation8 + $0x50] sm:$0xff]
      %v380 = vld [vmem:[#allocation8 + $0x58] sm:$0xff]
      %v381 = vld [vmem:[#allocation8 + $0x60] sm:$0xff]
      %v382 = vld [vmem:[#allocation8 + $0x68] sm:$0xff]
      %v383 = vld [vmem:[#allocation8 + $0x70] sm:$0xff]
      %v384 = vld [vmem:[#allocation8 + $0x78] sm:$0xff]
      %v385 = vld [vmem:[#allocation8 + $0x80] sm:$0xff]
      %v386 = vld [vmem:[#allocation8 + $0x88] sm:$0xff]
      %v387 = vld [vmem:[#allocation8 + $0x90] sm:$0xff]
      %v388 = vld [vmem:[#allocation8 + $0x98] sm:$0xff]
      %v389 = vld [vmem:[#allocation8 + $0xa0] sm:$0xff]
      %v390 = vld [vmem:[#allocation8 + $0xa8] sm:$0xff]
      %v391 = vld [vmem:[#allocation8 + $0xb0] sm:$0xff]
      %v392 = vld [vmem:[#allocation8 + $0xb8] sm:$0xff]
      %v393 = vld [vmem:[#allocation8 + $0xc0] sm:$0xff]
      %v394 = vld [vmem:[#allocation8 + $0xc8] sm:$0xff]
      %v395 = vld [vmem:[#allocation8 + $0xd0] sm:$0xff]
      %v396 = vld [vmem:[#allocation8 + $0xd8] sm:$0xff]
      %v397 = vld [vmem:[#allocation8 + $0xe0] sm:$0xff]
      %v398 = vld [vmem:[#allocation8 + $0xe8] sm:$0xff]
      %v399 = vld [vmem:[#allocation8 + $0xf0] sm:$0xff]
      %v400 = vld [vmem:[#allocation8 + $0xf8] sm:$0xff]
      %v401 = vld [vmem:[#allocation8 + $0x100] sm:$0xff]
      %v402 = vld [vmem:[#allocation8 + $0x108] sm:$0xff]
      %v403 = vld [vmem:[#allocation8 + $0x110] sm:$0xff]
      %v404 = vld [vmem:[#allocation8 + $0x118] sm:$0xff]
      %v405 = vld [vmem:[#allocation8 + $0x120] sm:$0xff]
      %v406 = vld [vmem:[#allocation8 + $0x128] sm:$0xff]
      %v407 = vld [vmem:[#allocation8 + $0x130] sm:$0xff]
      %v408 = vld [vmem:[#allocation8 + $0x138] sm:$0xff]
      %v409 = vld [vmem:[#allocation8 + $0x140] sm:$0xff]
      %v410 = vld [vmem:[#allocation8 + $0x148] sm:$0xff]
      %v411 = vld [vmem:[#allocation8 + $0x150] sm:$0xff]
      %v412 = vld [vmem:[#allocation8 + $0x158] sm:$0xff]
      %v413 = vld [vmem:[#allocation8 + $0x160] sm:$0xff]
      %v414 = vld [vmem:[#allocation8 + $0x168] sm:$0xff]
      %v415 = vld [vmem:[#allocation8 + $0x170] sm:$0xff]
      %v416 = vld [vmem:[#allocation8 + $0x178] sm:$0xff]
      %v417 = vld [vmem:[#allocation8 + $0x180] sm:$0xff]
      %v418 = vld [vmem:[#allocation8 + $0x188] sm:$0xff]
      %v419 = vld [vmem:[#allocation8 + $0x190] sm:$0xff]
      %v420 = vld [vmem:[#allocation8 + $0x198] sm:$0xff]
      %v421 = vld [vmem:[#allocation8 + $0x1a0] sm:$0xff]
      %v422 = vld [vmem:[#allocation8 + $0x1a8] sm:$0xff]
      %v423 = vld [vmem:[#allocation8 + $0x1b0] sm:$0xff]
      %v424 = vld [vmem:[#allocation8 + $0x1b8] sm:$0xff]
      %v425 = vld [vmem:[#allocation8 + $0x1c0] sm:$0xff]
      %v426 = vld [vmem:[#allocation8 + $0x1c8] sm:$0xff]
      %v427 = vld [vmem:[#allocation8 + $0x1d0] sm:$0xff]
      %v428 = vld [vmem:[#allocation8 + $0x1d8] sm:$0xff]
      %v429 = vld [vmem:[#allocation8 + $0x1e0] sm:$0xff]
      %v430 = vld [vmem:[#allocation8 + $0x1e8] sm:$0xff]
      %v431 = vld [vmem:[#allocation8 + $0x1f0] sm:$0xff]
      %v432 = vld [vmem:[#allocation8 + $0x1f8] sm:$0xff]
      %v433 = vld [vmem:[%s4] sm:$0x1]
      %v435 = vlaneseq
      %v436 = vshrl.u32 %v435, 7
      %v437 = vsub.s32 0, %v436
      %v438 = vrot.slane %v433, %v437
      %440 = vmatprep.subr.mxu0 0.0
      %441 = vmatpush1.msra.mxu0 %v369
      %442 = vmatprep.subr.mxu0 0.0
      %443 = vmatpush1.msra.mxu0 %v370
      %444 = vmatprep.subr.mxu0 0.0
      %445 = vmatpush1.msra.mxu0 %v371
      %446 = vmatprep.subr.mxu0 0.0
      %447 = vmatpush1.msra.mxu0 %v372
      %448 = vmatprep.subr.mxu0 0.0
      %449 = vmatpush1.msra.mxu0 %v373
      %450 = vmatprep.subr.mxu0 0.0
      %451 = vmatpush1.msra.mxu0 %v374
      %452 = vmatprep.subr.mxu0 0.0
      %453 = vmatpush1.msra.mxu0 %v375
      %454 = vmatprep.subr.mxu0 0.0
      %455 = vmatpush1.msra.mxu0 %v376
      %456 = vmatprep.subr.mxu0 0.0
      %457 = vmatpush1.msra.mxu0 %v377
      %458 = vmatprep.subr.mxu0 0.0
      %459 = vmatpush1.msra.mxu0 %v378
      %460 = vmatprep.subr.mxu0 0.0
      %461 = vmatpush1.msra.mxu0 %v379
      %462 = vmatprep.subr.mxu0 0.0
      %463 = vmatpush1.msra.mxu0 %v380
      %464 = vmatprep.subr.mxu0 0.0
      %465 = vmatpush1.msra.mxu0 %v381
      %466 = vmatprep.subr.mxu0 0.0
      %467 = vmatpush1.msra.mxu0 %v382
      %468 = vmatprep.subr.mxu0 0.0
      %469 = vmatpush1.msra.mxu0 %v383
      %470 = vmatprep.subr.mxu0 0.0
      %471 = vmatpush1.msra.mxu0 %v384
      %472 = vmatprep.subr.mxu0 0.0
      %473 = vmatpush1.msra.mxu0 %v385
      %474 = vmatprep.subr.mxu0 0.0
      %475 = vmatpush1.msra.mxu0 %v386
      %476 = vmatprep.subr.mxu0 0.0
      %477 = vmatpush1.msra.mxu0 %v387
      %478 = vmatprep.subr.mxu0 0.0
      %479 = vmatpush1.msra.mxu0 %v388
      %480 = vmatprep.subr.mxu0 0.0
      %481 = vmatpush1.msra.mxu0 %v389
      %482 = vmatprep.subr.mxu0 0.0
      %483 = vmatpush1.msra.mxu0 %v390
      %484 = vmatprep.subr.mxu0 0.0
      %485 = vmatpush1.msra.mxu0 %v391
      %486 = vmatprep.subr.mxu0 0.0
      %487 = vmatpush1.msra.mxu0 %v392
      %488 = vmatprep.subr.mxu0 0.0
      %489 = vmatpush1.msra.mxu0 %v393
      %490 = vmatprep.subr.mxu0 0.0
      %491 = vmatpush1.msra.mxu0 %v394
      %492 = vmatprep.subr.mxu0 0.0
      %493 = vmatpush1.msra.mxu0 %v395
      %494 = vmatprep.subr.mxu0 0.0
      %495 = vmatpush1.msra.mxu0 %v396
      %496 = vmatprep.subr.mxu0 0.0
      %497 = vmatpush1.msra.mxu0 %v397
      %498 = vmatprep.subr.mxu0 0.0
      %499 = vmatpush1.msra.mxu0 %v398
      %500 = vmatprep.subr.mxu0 0.0
      %501 = vmatpush1.msra.mxu0 %v399
      %502 = vmatprep.subr.mxu0 0.0
      %503 = vmatpush1.msra.mxu0 %v400
      %504 = vmatprep.mubr.f32.mxu0 %v366
      %505 = vmatmul.mubr.f32.gmra.mrb[0].mxu0 %v365
      %v506 = vpop.f32.mrb[0].mxu0
      %v507 = vadd.f32 %v438, %v506
      %v508 = vpop.f32.mrb[0].mxu0
      %509 = vdwg.mxu0
      %510 = vmatprep.subr.mxu0 0.0
      %511 = vmatpush1.msra.mxu0 %v401
      %512 = vmatprep.subr.mxu0 0.0
      %513 = vmatpush1.msra.mxu0 %v402
      %514 = vmatprep.subr.mxu0 0.0
      %515 = vmatpush1.msra.mxu0 %v403
      %516 = vmatprep.subr.mxu0 0.0
      %517 = vmatpush1.msra.mxu0 %v404
      %518 = vmatprep.subr.mxu0 0.0
      %519 = vmatpush1.msra.mxu0 %v405
      %520 = vmatprep.subr.mxu0 0.0
      %521 = vmatpush1.msra.mxu0 %v406
      %522 = vmatprep.subr.mxu0 0.0
      %523 = vmatpush1.msra.mxu0 %v407
      %524 = vmatprep.subr.mxu0 0.0
      %525 = vmatpush1.msra.mxu0 %v408
      %526 = vmatprep.subr.mxu0 0.0
      %527 = vmatpush1.msra.mxu0 %v409
      %528 = vmatprep.subr.mxu0 0.0
      %529 = vmatpush1.msra.mxu0 %v410
      %530 = vmatprep.subr.mxu0 0.0
      %531 = vmatpush1.msra.mxu0 %v411
      %532 = vmatprep.subr.mxu0 0.0
      %533 = vmatpush1.msra.mxu0 %v412
      %534 = vmatprep.subr.mxu0 0.0
      %535 = vmatpush1.msra.mxu0 %v413
      %536 = vmatprep.subr.mxu0 0.0
      %537 = vmatpush1.msra.mxu0 %v414
      %538 = vmatprep.subr.mxu0 0.0
      %539 = vmatpush1.msra.mxu0 %v415
      %540 = vmatprep.subr.mxu0 0.0
      %541 = vmatpush1.msra.mxu0 %v416
      %542 = vmatprep.subr.mxu0 0.0
      %543 = vmatpush1.msra.mxu0 %v417
      %544 = vmatprep.subr.mxu0 0.0
      %545 = vmatpush1.msra.mxu0 %v418
      %546 = vmatprep.subr.mxu0 0.0
      %547 = vmatpush1.msra.mxu0 %v419
      %548 = vmatprep.subr.mxu0 0.0
      %549 = vmatpush1.msra.mxu0 %v420
      %550 = vmatprep.subr.mxu0 0.0
      %551 = vmatpush1.msra.mxu0 %v421
      %552 = vmatprep.subr.mxu0 0.0
      %553 = vmatpush1.msra.mxu0 %v422
      %554 = vmatprep.subr.mxu0 0.0
      %555 = vmatpush1.msra.mxu0 %v423
      %556 = vmatprep.subr.mxu0 0.0
      %557 = vmatpush1.msra.mxu0 %v424
      %558 = vmatprep.subr.mxu0 0.0
      %559 = vmatpush1.msra.mxu0 %v425
      %560 = vmatprep.subr.mxu0 0.0
      %561 = vmatpush1.msra.mxu0 %v426
      %562 = vmatprep.subr.mxu0 0.0
      %563 = vmatpush1.msra.mxu0 %v427
      %564 = vmatprep.subr.mxu0 0.0
      %565 = vmatpush1.msra.mxu0 %v428
      %566 = vmatprep.subr.mxu0 0.0
      %567 = vmatpush1.msra.mxu0 %v429
      %568 = vmatprep.subr.mxu0 0.0
      %569 = vmatpush1.msra.mxu0 %v430
      %570 = vmatprep.subr.mxu0 0.0
      %571 = vmatpush1.msra.mxu0 %v431
      %572 = vmatprep.subr.mxu0 0.0
      %573 = vmatpush1.msra.mxu0 %v432
      %574 = vmatprep.mubr.f32.mxu0 %v368
      %575 = vmatmul.mubr.f32.gmra.mrb[0].mxu0 %v367
      %v576 = vpop.f32.mrb[0].mxu0
      %v577 = vadd.f32 %v507, %v576
      %v578 = vpop.f32.mrb[0].mxu0
      %579 = vdwg.mxu0
      %580 = vst [vmem:[#allocation9] sm:$0x3] %v577
    $region41: #{tpu_custom_call.1} parent=1 // pred_fallthru
      _
    // Predicated region
    $region42: #{tpu_custom_call.1} parent=1 // pred_check
      _
    $region43: #{tpu_custom_call.1} parent=1 // pred_check_branch
      %582 = sbr.rel (0) target = $region45
    $region44: #{tpu_custom_call.1} parent=1 // pred_region
      %s584 = ssub.s32 32, 32
      %585 = vsyncadd [#allocation5], %s584
      %s587 = sshll.u32 [#allocation9], 4
      %s588 = int_to_ptr.vmem [resolvable:$true] %s587
      %590 = dma.vmem_to_hbm [thread:$0]  %s588, 32, %s5, [#allocation5]
    $region45: #{tpu_custom_call.1} parent=1 // pred_fallthru
      _
    // Predicated region
    $region46: #{tpu_custom_call.1} parent=1 // pred_check
      _
    $region47: #{tpu_custom_call.1} parent=1 // pred_check_branch
      %592 = sbr.rel (0) target = $region49
    $region48: #{tpu_custom_call.1} parent=1 // pred_region
      %593 = dma.done [#allocation5], 32
    $region49: #{tpu_custom_call.1} parent=1 // pred_fallthru
      _
    %594 = vsyncpa [#allocation4], 1
    %595 = vsyncpa [#allocation7], 1
    %596 = vsyncpa [#allocation5], 1

</llo_original>
